<compile_context>
chip_gen: v6e
topology: v6e:2x2x1
jax: 0.10.0
libtpu: 0.0.40
codegen_flags: <defaults>
</compile_context>

<pallas_src>
import functools
import math
import warnings

import jax
import jax.numpy as jnp
from jax.experimental import pallas as pl
from jax.experimental.pallas import tpu as pltpu


_LANE = 128                       # last block dim: exactly one lane width
_ROW_TILE_MAX = 8192              # 8192 * 128 * 4 B = 4 MiB per f32 block
_VMEM_LIMIT_BYTES = 32 * 1024 * 1024
_SEED_MIX = -1640531527           # 0x9E3779B1 as int32 (golden-ratio mixer)


def _cdiv(a, b):
    return -(-a // b)


def _round_up(a, b):
    return _cdiv(a, b) * b


def _sublane(dtype):
    itemsize = jnp.dtype(dtype).itemsize
    return max(8, 32 // max(itemsize, 1))   # 8 for f32, 16 for bf16, 32 for i8


# ----------------------------------------------------------------------------
# Schedule buffers (deterministic, mirrors GaussianForwardProcess.__init__)
# ----------------------------------------------------------------------------
def make_gaussian_forward_buffers(num_timesteps=1000, predict_mode="v"):
    # beta_scheduler default: standard DDPM linear schedule 1e-4 .. 0.02
    betas = jnp.linspace(1e-4, 2e-2, num_timesteps, dtype=jnp.float32)
    betas_sqrt = jnp.sqrt(betas)
    alphas = 1.0 - betas
    alphas_cumprod = jnp.cumprod(alphas, axis=0)
    alphas_cumprod_sqrt = jnp.sqrt(alphas_cumprod)
    alphas_one_minus_cumprod_sqrt = jnp.sqrt(1.0 - alphas_cumprod)
    alphas_sqrt = jnp.sqrt(alphas)
    alphas_cumprod_recip_sqrt = jnp.sqrt(1.0 / alphas_cumprod)
    alphas_cumprod_minus_one_recip_sqrt = jnp.sqrt(1.0 / alphas_cumprod - 1.0)
    alphas_cumprod_prev = jnp.concatenate(
        [jnp.ones((1,), jnp.float32), alphas_cumprod[:-1]], axis=0
    )
    posterior_variance = betas * (1.0 - alphas_cumprod_prev) / (1.0 - alphas_cumprod)
    posterior_variance_clipped = posterior_variance.at[0].set(posterior_variance[1])
    posterior_log_variance_clipped = jnp.log(posterior_variance_clipped)
    snr = alphas_cumprod / (1.0 - alphas_cumprod)
    min_snr_gamma = 5.0
    snr_clamped = jnp.maximum(snr, min_snr_gamma)   # == torch.clamp(snr, min=5)
    if predict_mode == "eps":
        loss_weight = snr_clamped / snr
    elif predict_mode == "x0":
        loss_weight = snr_clamped
    else:  # 'v'
        loss_weight = snr_clamped / (snr + 1.0)
    return dict(
        betas=betas,
        betas_sqrt=betas_sqrt,
        alphas=alphas,
        alphas_cumprod=alphas_cumprod,
        alphas_cumprod_sqrt=alphas_cumprod_sqrt,
        alphas_one_minus_cumprod_sqrt=alphas_one_minus_cumprod_sqrt,
        alphas_sqrt=alphas_sqrt,
        alphas_cumprod_recip_sqrt=alphas_cumprod_recip_sqrt,
        alphas_cumprod_minus_one_recip_sqrt=alphas_cumprod_minus_one_recip_sqrt,
        alphas_cumprod_prev=alphas_cumprod_prev,
        posterior_variance=posterior_variance,
        posterior_variance_clipped=posterior_variance_clipped,
        posterior_log_variance_clipped=posterior_log_variance_clipped,
        loss_weight=loss_weight,
    )


# ----------------------------------------------------------------------------
# Kernels: out = a[b] * x + s[b] * noise
#   prefetch (SMEM): a (B,) f32, s (B,) f32, seed (1,) i32
#   blocks (VMEM):   (1, row_tile, 128)
# ----------------------------------------------------------------------------
def _mixed_seed(seed_ref):
    # Golden-ratio mixing so adjacent tiles do not get consecutive seeds.
    tile_id = pl.program_id(0) * pl.num_programs(1) + pl.program_id(1)
    return seed_ref[0] ^ (tile_id * _SEED_MIX)


def _q_sample_kernel_prng_noise_out(a_ref, s_ref, seed_ref, x_ref, o_ref, n_ref):
    b = pl.program_id(0)
    pltpu.prng_seed(_mixed_seed(seed_ref))
    x = x_ref[0].astype(jnp.float32)                       # (row_tile, 128)
    # TODO(synk): if v7x bundle profiling shows the EUP (inside the
    # uniform->normal transform) becomes the binding slot, switch to bf16
    # normals (2x packed EUP/VPU throughput on v6e/v7x) and upcast on the VPU.
    noise = pltpu.stateful_normal(x.shape, jnp.float32)
    o_ref[0] = (a_ref[b] * x + s_ref[b] * noise).astype(o_ref.dtype)
    n_ref[0] = noise.astype(n_ref.dtype)


def _q_sample_kernel_prng(a_ref, s_ref, seed_ref, x_ref, o_ref):
    b = pl.program_id(0)
    pltpu.prng_seed(_mixed_seed(seed_ref))
    x = x_ref[0].astype(jnp.float32)
    noise = pltpu.stateful_normal(x.shape, jnp.float32)
    o_ref[0] = (a_ref[b] * x + s_ref[b] * noise).astype(o_ref.dtype)


def _q_sample_kernel_ext_noise(a_ref, s_ref, seed_ref, x_ref, n_ref, o_ref):
    del seed_ref  # unused in this variant
    b = pl.program_id(0)
    o_ref[0] = (
        a_ref[b] * x_ref[0].astype(jnp.float32)
        + s_ref[b] * n_ref[0].astype(jnp.float32)
    ).astype(o_ref.dtype)


# ----------------------------------------------------------------------------
# Jitted wrapper around pallas_call
# ----------------------------------------------------------------------------
@functools.partial(jax.jit, static_argnames=("return_noise", "in_kernel_noise"))
def _gaussian_q_sample(x_0, a_t, s_t, seed, ext_noise, *, return_noise,
                       in_kernel_noise):
    orig_shape = x_0.shape
    batch = orig_shape[0]
    n_elems = math.prod(orig_shape[1:])
    rows = _cdiv(n_elems, _LANE)
    pad = rows * _LANE - n_elems

    # TODO(synk): when n_elems % 128 != 0 the pad below and the slice in
    # from_rows each cost one extra HBM round-trip (pallas_call is a fusion
    # boundary); a fully pad-free path needs in-kernel tail masking on a 2-D
    # layout.  The common divisible case (e.g. 4*16*16=1024) is pad-free.
    def to_rows(y):
        y2 = y.reshape(batch, n_elems)
        if pad:
            y2 = jnp.pad(y2, ((0, 0), (0, pad)))
        return y2.reshape(batch, rows, _LANE)

    def from_rows(y3):
        y2 = y3.reshape(batch, rows * _LANE)
        if pad:
            y2 = y2[:, :n_elems]
        return y2.reshape(orig_shape)

    x3 = to_rows(x_0)

    # Row-tile selection:
    #  * cap at _ROW_TILE_MAX (amortize the ~0.35 us/step grid overhead),
    #  * keep tiles sublane-aligned (8 f32 / 16 bf16) -> no tail vst.msk,
    #  * if batch == 1 split rows into >= 2 tiles so both v7x TCs get work,
    #  * single-tile case uses the full row extent (always a legal block).
    sub = _sublane(x_0.dtype)
    min_tiles = 2 if batch == 1 else 1
    n_row_tiles = max(_cdiv(rows, _ROW_TILE_MAX), min_tiles)
    row_tile = _round_up(_cdiv(rows, n_row_tiles), sub)
    if row_tile >= rows:
        row_tile = rows
        n_row_tiles = 1
    else:
        n_row_tiles = _cdiv(rows, row_tile)

    grid = (batch, n_row_tiles)
    block = (1, row_tile, _LANE)
    spec = pl.BlockSpec(block, lambda b, r, *_: (b, r, 0))
    tile_struct = jax.ShapeDtypeStruct((batch, rows, _LANE), x_0.dtype)

    a32 = a_t.astype(jnp.float32)        # keep scalars full precision in SMEM
    s32 = s_t.astype(jnp.float32)
    seed_i32 = seed.astype(jnp.int32)

    compiler_params = pltpu.CompilerParams(
        dimension_semantics=("parallel", "parallel"),
        vmem_limit_bytes=_VMEM_LIMIT_BYTES,
    )

    if in_kernel_noise:
        in_specs = [spec]
        operands = (x3,)
        if return_noise:
            kernel = _q_sample_kernel_prng_noise_out
            out_shape = (tile_struct, tile_struct)
            out_specs = (spec, spec)
        else:
            kernel = _q_sample_kernel_prng
            out_shape = tile_struct
            out_specs = spec
    else:
        in_specs = [spec, spec]
        operands = (x3, to_rows(ext_noise))
        kernel = _q_sample_kernel_ext_noise
        out_shape = tile_struct
        out_specs = spec

    result = pl.pallas_call(
        kernel,
        out_shape=out_shape,
        grid_spec=pltpu.PrefetchScalarGridSpec(
            num_scalar_prefetch=3,
            grid=grid,
            in_specs=in_specs,
            out_specs=out_specs,
        ),
        compiler_params=compiler_params,
    )(a32, s32, seed_i32, *operands)

    if in_kernel_noise:
        if return_noise:
            out3, noise3 = result
            return from_rows(out3), from_rows(noise3)
        return from_rows(result), None
    return from_rows(result), (ext_noise if return_noise else None)


# ----------------------------------------------------------------------------
# One-time (memoized) capability probe for the in-kernel hardware PRNG.
# ----------------------------------------------------------------------------
@functools.lru_cache(maxsize=1)
def _probe_in_kernel_prng():
    def k(seed_ref, o_ref):
        pltpu.prng_seed(seed_ref[0])
        o_ref[0] = pltpu.stateful_normal((8, _LANE), jnp.float32)

    try:
        out = pl.pallas_call(
            k,
            out_shape=jax.ShapeDtypeStruct((1, 8, _LANE), jnp.float32),
            grid_spec=pltpu.PrefetchScalarGridSpec(
                num_scalar_prefetch=1,
                grid=(1,),
                in_specs=[],
                out_specs=pl.BlockSpec((1, 8, _LANE), lambda i, *_: (0, 0, 0)),
            ),
        )(jnp.zeros((1,), jnp.int32))
        jax.block_until_ready(out)
        return True
    except Exception as e:  # pragma: no cover - environment dependent
        warnings.warn(
            "In-kernel TPU PRNG unavailable (%r); falling back to host-side "
            "jax.random.normal, which adds one full HBM write+read of the "
            "noise tensor (~1.5-1.7x slower)." % (e,)
        )
        return False


# ----------------------------------------------------------------------------
# GaussianForwardProcess.forward equivalent
# ----------------------------------------------------------------------------
class GaussianForwardProcess:
    def __init__(self, num_timesteps=1000, predict_mode="v"):
        self.num_timesteps = num_timesteps
        self.predict_mode = predict_mode
        self.buffers = make_gaussian_forward_buffers(num_timesteps, predict_mode)
        # Prefer generating the noise inside the kernel (saves one full HBM
        # write + read of a B*C*H*W array); memoized probe falls back to
        # host-side RNG if the PRNG primitives are unavailable.
        self._use_kernel_prng = _probe_in_kernel_prng()

    def forward(self, x_0, t, key, return_noise=False):
        """q(x_t | x_0) = N(x_t; sqrt(acp[t]) * x_0, (1 - acp[t]) I).

        NOTE: the PyTorch host-blocking `assert (t < num_timesteps).all()` is
        intentionally dropped (it forces a device->host sync every call);
        out-of-range t silently clamps under JAX gather semantics.
        """
        a_t = self.buffers["alphas_cumprod_sqrt"][t]              # (B,) f32
        s_t = self.buffers["alphas_one_minus_cumprod_sqrt"][t]    # (B,) f32

        if self._use_kernel_prng:
            seed = jax.random.randint(key, (1,), 0, 2 ** 30, dtype=jnp.int32)
            ext_noise = None
        else:
            seed = jnp.zeros((1,), jnp.int32)
            ext_noise = jax.random.normal(key, x_0.shape, dtype=x_0.dtype)

        out, noise = _gaussian_q_sample(
            x_0, a_t, s_t, seed, ext_noise,
            return_noise=return_noise,
            in_kernel_noise=self._use_kernel_prng,
        )
        if return_noise:
            return out, noise
        return out


if __name__ == "__main__":
    B, C, H, W = 2, 4, 16, 16  # NCHW
    T = 1000

    key = jax.random.PRNGKey(0)
    kx, kn = jax.random.split(key)
    x_0 = jax.random.normal(kx, (B, C, H, W), dtype=jnp.float32)
    t = jnp.array([3, 700], dtype=jnp.int32)

    proc = GaussianForwardProcess(num_timesteps=T, predict_mode="v")

    a = proc.buffers["alphas_cumprod_sqrt"][t].reshape(B, 1, 1, 1)
    s = proc.buffers["alphas_one_minus_cumprod_sqrt"][t].reshape(B, 1, 1, 1)

    # --- default path (in-kernel PRNG if available) --------------------------
    out, noise = proc.forward(x_0, t, kn, return_noise=True)
    out = jax.block_until_ready(out)
    ref = a * x_0 + s * noise
    assert out.shape == x_0.shape and out.dtype == x_0.dtype
    assert jnp.allclose(out, ref, atol=1e-5, rtol=1e-5)

    out_nr = jax.block_until_ready(proc.forward(x_0, t, kn, return_noise=False))
    assert out_nr.shape == x_0.shape

    # --- batch == 1 exercises the megacore row-splitting branch --------------
    x_b1 = jax.random.normal(jax.random.PRNGKey(2), (1, 4, 32, 32), jnp.float32)
    t1 = jnp.array([500], dtype=jnp.int32)
    a1 = proc.buffers["alphas_cumprod_sqrt"][t1].reshape(1, 1, 1, 1)
    s1 = proc.buffers["alphas_one_minus_cumprod_sqrt"][t1].reshape(1, 1, 1, 1)
    out1, noise1 = proc.forward(x_b1, t1, kn, return_noise=True)
    out1 = jax.block_until_ready(out1)
    assert jnp.allclose(out1, a1 * x_b1 + s1 * noise1, atol=1e-5, rtol=1e-5)

    # --- odd (non-128-multiple) spatial size exercises the padding path ------
    x_odd = jax.random.normal(jax.random.PRNGKey(1), (B, 3, 15, 15), jnp.float32)
    out_odd, noise_odd = proc.forward(x_odd, t, kn, return_noise=True)
    out_odd = jax.block_until_ready(out_odd)
    assert jnp.allclose(out_odd, a * x_odd + s * noise_odd, atol=1e-5, rtol=1e-5)

    # --- external-noise fallback kernel exercised explicitly -----------------
    proc._use_kernel_prng = False
    out_f, noise_f = proc.forward(x_0, t, kn, return_noise=True)
    out_f = jax.block_until_ready(out_f)
    assert jnp.allclose(out_f, a * x_0 + s * noise_f, atol=1e-5, rtol=1e-5)

    print("KERNEL_OK")
</pallas_src>

<mosaic_0001>
module attributes {stable_mosaic.version = 11 : i64} {
  func.func @k(%arg0: i32, %arg1: memref<1xi32, #tpu.memory_space<smem>>, %arg2: memref<1x8x128xf32, #tpu.memory_space<vmem>>) attributes {dimension_semantics = [#tpu.dimension_semantics<arbitrary>], iteration_bounds = array<i64: 1>, scalar_prefetch = 1 : i64, scratch_operands = 0 : i64, tpu.core_type = #tpu.core_type<tc>, window_params = [{pipeline_mode = #tpu.pipeline_mode<synchronous>, transform_indices = @transform_0, window_bounds = array<i64: 1, 8, 128>}]} {
    %c0 = arith.constant 0 : index
    %0 = memref.load %arg1[%c0] : memref<1xi32, #tpu.memory_space<smem>>
    "tpu.prng_set_seed_32"(%0) : (i32) -> ()
    %c0_i32 = arith.constant 0 : i32
    %c0_i32_0 = arith.constant 0 : i32
    %cst = arith.constant -0.99999994 : f32
    %cst_1 = arith.constant 1.000000e+00 : f32
    %1 = vector.broadcast %cst : f32 to vector<1x1xf32>
    %2 = vector.broadcast %cst_1 : f32 to vector<1x1xf32>
    %3 = "tpu.prng_random_bits"() : () -> vector<8x128xi32>
    %c9_i32 = arith.constant 9 : i32
    %4 = vector.broadcast %c9_i32 : i32 to vector<8x128xi32>
    %5 = arith.shrui %3, %4 : vector<8x128xi32>
    %c1065353216_i32 = arith.constant 1065353216 : i32
    %6 = vector.broadcast %c1065353216_i32 : i32 to vector<8x128xi32>
    %7 = arith.ori %5, %6 : vector<8x128xi32>
    %8 = tpu.bitcast %7 : vector<8x128xi32> -> vector<8x128xf32>
    %cst_2 = arith.constant 1.000000e+00 : f32
    %9 = vector.broadcast %cst_2 : f32 to vector<8x128xf32>
    %10 = arith.subf %8, %9 : vector<8x128xf32>
    %11 = arith.subf %2, %1 : vector<1x1xf32>
    %12 = vector.broadcast %11 : vector<1x1xf32> to vector<8x128xf32>
    %13 = arith.mulf %10, %12 : vector<8x128xf32>
    %14 = vector.broadcast %1 : vector<1x1xf32> to vector<8x128xf32>
    %15 = arith.addf %13, %14 : vector<8x128xf32>
    %16 = vector.broadcast %1 : vector<1x1xf32> to vector<8x128xf32>
    %17 = arith.maximumf %16, %15 : vector<8x128xf32>
    %cst_3 = arith.constant 0.000000e+00 : f32
    %18 = vector.broadcast %cst_3 : f32 to vector<8x128xf32>
    %19 = arith.subf %18, %17 : vector<8x128xf32>
    %20 = arith.mulf %17, %19 : vector<8x128xf32>
    %21 = math.log1p %20 : vector<8x128xf32>
    %cst_4 = arith.constant 0.000000e+00 : f32
    %22 = vector.broadcast %cst_4 : f32 to vector<8x128xf32>
    %23 = arith.subf %22, %21 : vector<8x128xf32>
    %cst_5 = arith.constant 5.000000e+00 : f32
    %24 = vector.broadcast %cst_5 : f32 to vector<8x128xf32>
    %25 = arith.cmpf olt, %23, %24 : vector<8x128xf32>
    %cst_6 = arith.constant 2.500000e+00 : f32
    %26 = vector.broadcast %cst_6 : f32 to vector<8x128xf32>
    %27 = arith.subf %23, %26 : vector<8x128xf32>
    %28 = math.sqrt %23 : vector<8x128xf32>
    %cst_7 = arith.constant 3.000000e+00 : f32
    %29 = vector.broadcast %cst_7 : f32 to vector<8x128xf32>
    %30 = arith.subf %28, %29 : vector<8x128xf32>
    %31 = arith.select %25, %27, %30 : vector<8x128xi1>, vector<8x128xf32>
    %cst_8 = arith.constant 2.81022636E-8 : f32
    %cst_9 = arith.constant -2.00214257E-4 : f32
    %32 = vector.broadcast %cst_8 : f32 to vector<8x128xf32>
    %33 = vector.broadcast %cst_9 : f32 to vector<8x128xf32>
    %34 = arith.select %25, %32, %33 : vector<8x128xi1>, vector<8x128xf32>
    %cst_10 = arith.constant 3.43273939E-7 : f32
    %cst_11 = arith.constant 1.00950558E-4 : f32
    %35 = vector.broadcast %cst_10 : f32 to vector<8x128xf32>
    %36 = vector.broadcast %cst_11 : f32 to vector<8x128xf32>
    %37 = arith.select %25, %35, %36 : vector<8x128xi1>, vector<8x128xf32>
    %38 = arith.mulf %34, %31 : vector<8x128xf32>
    %39 = arith.addf %37, %38 : vector<8x128xf32>
    %cst_12 = arith.constant -3.5233877E-6 : f32
    %cst_13 = arith.constant 0.00134934322 : f32
    %40 = vector.broadcast %cst_12 : f32 to vector<8x128xf32>
    %41 = vector.broadcast %cst_13 : f32 to vector<8x128xf32>
    %42 = arith.select %25, %40, %41 : vector<8x128xi1>, vector<8x128xf32>
    %43 = arith.mulf %39, %31 : vector<8x128xf32>
    %44 = arith.addf %42, %43 : vector<8x128xf32>
    %cst_14 = arith.constant -4.39150654E-6 : f32
    %cst_15 = arith.constant -0.00367342844 : f32
    %45 = vector.broadcast %cst_14 : f32 to vector<8x128xf32>
    %46 = vector.broadcast %cst_15 : f32 to vector<8x128xf32>
    %47 = arith.select %25, %45, %46 : vector<8x128xi1>, vector<8x128xf32>
    %48 = arith.mulf %44, %31 : vector<8x128xf32>
    %49 = arith.addf %47, %48 : vector<8x128xf32>
    %cst_16 = arith.constant 2.1858087E-4 : f32
    %cst_17 = arith.constant 0.00573950773 : f32
    %50 = vector.broadcast %cst_16 : f32 to vector<8x128xf32>
    %51 = vector.broadcast %cst_17 : f32 to vector<8x128xf32>
    %52 = arith.select %25, %50, %51 : vector<8x128xi1>, vector<8x128xf32>
    %53 = arith.mulf %49, %31 : vector<8x128xf32>
    %54 = arith.addf %52, %53 : vector<8x128xf32>
    %cst_18 = arith.constant -0.00125372503 : f32
    %cst_19 = arith.constant -0.0076224613 : f32
    %55 = vector.broadcast %cst_18 : f32 to vector<8x128xf32>
    %56 = vector.broadcast %cst_19 : f32 to vector<8x128xf32>
    %57 = arith.select %25, %55, %56 : vector<8x128xi1>, vector<8x128xf32>
    %58 = arith.mulf %54, %31 : vector<8x128xf32>
    %59 = arith.addf %57, %58 : vector<8x128xf32>
    %cst_20 = arith.constant -0.00417768164 : f32
    %cst_21 = arith.constant 0.00943887047 : f32
    %60 = vector.broadcast %cst_20 : f32 to vector<8x128xf32>
    %61 = vector.broadcast %cst_21 : f32 to vector<8x128xf32>
    %62 = arith.select %25, %60, %61 : vector<8x128xi1>, vector<8x128xf32>
    %63 = arith.mulf %59, %31 : vector<8x128xf32>
    %64 = arith.addf %62, %63 : vector<8x128xf32>
    %cst_22 = arith.constant 0.246640727 : f32
    %cst_23 = arith.constant 1.00167406 : f32
    %65 = vector.broadcast %cst_22 : f32 to vector<8x128xf32>
    %66 = vector.broadcast %cst_23 : f32 to vector<8x128xf32>
    %67 = arith.select %25, %65, %66 : vector<8x128xi1>, vector<8x128xf32>
    %68 = arith.mulf %64, %31 : vector<8x128xf32>
    %69 = arith.addf %67, %68 : vector<8x128xf32>
    %cst_24 = arith.constant 1.50140941 : f32
    %cst_25 = arith.constant 2.83297682 : f32
    %70 = vector.broadcast %cst_24 : f32 to vector<8x128xf32>
    %71 = vector.broadcast %cst_25 : f32 to vector<8x128xf32>
    %72 = arith.select %25, %70, %71 : vector<8x128xi1>, vector<8x128xf32>
    %73 = arith.mulf %69, %31 : vector<8x128xf32>
    %74 = arith.addf %72, %73 : vector<8x128xf32>
    %75 = math.absf %17 : vector<8x128xf32>
    %cst_26 = arith.constant 1.000000e+00 : f32
    %76 = vector.broadcast %cst_26 : f32 to vector<8x128xf32>
    %77 = arith.cmpf oeq, %75, %76 : vector<8x128xf32>
    %cst_27 = arith.constant 0x7F800000 : f32
    %78 = vector.broadcast %cst_27 : f32 to vector<8x128xf32>
    %79 = arith.mulf %78, %17 : vector<8x128xf32>
    %80 = arith.mulf %74, %17 : vector<8x128xf32>
    %81 = arith.select %77, %79, %80 : vector<8x128xi1>, vector<8x128xf32>
    %cst_28 = arith.constant 1.41421354 : f32
    %82 = vector.broadcast %cst_28 : f32 to vector<8x128xf32>
    %83 = arith.mulf %82, %81 : vector<8x128xf32>
    %c0_29 = arith.constant 0 : index
    %c0_30 = arith.constant 0 : index
    %c0_31 = arith.constant 0 : index
    %84 = vector.load %arg2[%c0_29, %c0_30, %c0_31] : memref<1x8x128xf32, #tpu.memory_space<vmem>>, vector<1x8x128xf32>
    %85 = vector.shape_cast %84 : vector<1x8x128xf32> to vector<8x128xf32>
    %86 = vector.shape_cast %83 : vector<8x128xf32> to vector<1x8x128xf32>
    tpu.vector_store %arg2[%c0_29, %c0_30, %c0_31], %86 {strides = array<i32>} : memref<1x8x128xf32, #tpu.memory_space<vmem>>, vector<1x8x128xf32>,
    return
  }
  func.func @transform_0(%arg0: i32, %arg1: memref<1xi32, #tpu.memory_space<smem>>) -> (i32, i32, i32) {
    %c0_i32 = arith.constant 0 : i32
    %c0_i32_0 = arith.constant 0 : i32
    %c0_i32_1 = arith.constant 0 : i32
    %c0_i32_2 = arith.constant 0 : i32
    return %c0_i32, %c0_i32_0, %c0_i32_1 : i32, i32, i32
  }
}

module attributes {stable_mosaic.version = 11 : i64} {
  func.func @_q_sample_kernel_ext_noise(%arg0: i32, %arg1: i32, %arg2: memref<2xf32, #tpu.memory_space<smem>>, %arg3: memref<2xf32, #tpu.memory_space<smem>>, %arg4: memref<1xi32, #tpu.memory_space<smem>>, %arg5: memref<1x8x128xf32, #tpu.memory_space<vmem>>, %arg6: memref<1x8x128xf32, #tpu.memory_space<vmem>>, %arg7: memref<1x8x128xf32, #tpu.memory_space<vmem>>) attributes {dimension_semantics = [#tpu.dimension_semantics<parallel>, #tpu.dimension_semantics<parallel>], iteration_bounds = array<i64: 2, 1>, scalar_prefetch = 3 : i64, scratch_operands = 0 : i64, tpu.core_type = #tpu.core_type<tc>, window_params = [{transform_indices = @transform_0, window_bounds = array<i64: 1, 8, 128>}, {transform_indices = @transform_1, window_bounds = array<i64: 1, 8, 128>}, {transform_indices = @transform_2, window_bounds = array<i64: 1, 8, 128>}]} {
    %0 = arith.index_cast %arg0 : i32 to index
    %1 = memref.load %arg2[%0] : memref<2xf32, #tpu.memory_space<smem>>
    %c0 = arith.constant 0 : index
    %c0_0 = arith.constant 0 : index
    %c0_1 = arith.constant 0 : index
    %2 = vector.load %arg5[%c0, %c0_0, %c0_1] : memref<1x8x128xf32, #tpu.memory_space<vmem>>, vector<1x8x128xf32>
    %3 = vector.shape_cast %2 : vector<1x8x128xf32> to vector<8x128xf32>
    %4 = vector.broadcast %1 : f32 to vector<8x128xf32>
    %5 = arith.mulf %4, %3 : vector<8x128xf32>
    %6 = arith.index_cast %arg0 : i32 to index
    %7 = memref.load %arg3[%6] : memref<2xf32, #tpu.memory_space<smem>>
    %c0_2 = arith.constant 0 : index
    %c0_3 = arith.constant 0 : index
    %c0_4 = arith.constant 0 : index
    %8 = vector.load %arg6[%c0_2, %c0_3, %c0_4] : memref<1x8x128xf32, #tpu.memory_space<vmem>>, vector<1x8x128xf32>
    %9 = vector.shape_cast %8 : vector<1x8x128xf32> to vector<8x128xf32>
    %10 = vector.broadcast %7 : f32 to vector<8x128xf32>
    %11 = arith.mulf %10, %9 : vector<8x128xf32>
    %12 = arith.addf %5, %11 : vector<8x128xf32>
    %c0_5 = arith.constant 0 : index
    %c0_6 = arith.constant 0 : index
    %c0_7 = arith.constant 0 : index
    %13 = vector.load %arg7[%c0_5, %c0_6, %c0_7] : memref<1x8x128xf32, #tpu.memory_space<vmem>>, vector<1x8x128xf32>
    %14 = vector.shape_cast %13 : vector<1x8x128xf32> to vector<8x128xf32>
    %15 = vector.shape_cast %12 : vector<8x128xf32> to vector<1x8x128xf32>
    tpu.vector_store %arg7[%c0_5, %c0_6, %c0_7], %15 {strides = array<i32>} : memref<1x8x128xf32, #tpu.memory_space<vmem>>, vector<1x8x128xf32>,
    return
  }
  func.func @transform_0(%arg0: i32, %arg1: i32, %arg2: memref<2xf32, #tpu.memory_space<smem>>, %arg3: memref<2xf32, #tpu.memory_space<smem>>, %arg4: memref<1xi32, #tpu.memory_space<smem>>) -> (i32, i32, i32) {
    %c0_i32 = arith.constant 0 : i32
    %c0_i32_0 = arith.constant 0 : i32
    return %arg0, %arg1, %c0_i32 : i32, i32, i32
  }
  func.func @transform_1(%arg0: i32, %arg1: i32, %arg2: memref<2xf32, #tpu.memory_space<smem>>, %arg3: memref<2xf32, #tpu.memory_space<smem>>, %arg4: memref<1xi32, #tpu.memory_space<smem>>) -> (i32, i32, i32) {
    %c0_i32 = arith.constant 0 : i32
    %c0_i32_0 = arith.constant 0 : i32
    return %arg0, %arg1, %c0_i32 : i32, i32, i32
  }
  func.func @transform_2(%arg0: i32, %arg1: i32, %arg2: memref<2xf32, #tpu.memory_space<smem>>, %arg3: memref<2xf32, #tpu.memory_space<smem>>, %arg4: memref<1xi32, #tpu.memory_space<smem>>) -> (i32, i32, i32) {
    %c0_i32 = arith.constant 0 : i32
    %c0_i32_0 = arith.constant 0 : i32
    return %arg0, %arg1, %c0_i32 : i32, i32, i32
  }
}

</mosaic_0001>

<llo_original>
// kernel: tpu_custom_call.1
$region0: #{tpu_custom_call.1}
  #allocation0 [shape = 'u32[]', space=smem, size = 0x4, offset = 0x4, fixed_abs, tag = 'smem constant byte address 0x4 - core index']
  #allocation1 [shape = 'u32[144,128]{1,0:T(1,128)}', space=vmem, size = 0x12000, scoped, tag = 'internal scratch']
  #allocation2 [shape = 's32[1]{0}', space=sflag, size = 0x4, scoped, tag = 'scoped memory for tpu_custom_call.1']
  #allocation3 [shape = 's32[1]{0:T(128)S(6)}', space=smem, size = 0x200, scoped, tag = 'prefetched SMEM operand 0']
  %s0 = inlined_call_operand.<no memory space> [shape: s32[1], index: 0, kind: input, shape index: {}]
  %s1 = inlined_call_operand.hbm [shape: f32[1,8,128], index: 1, kind: output, shape index: {}]
  %s2 = sld [smem:[#allocation0]]
  $region10: #{tpu_custom_call.1} parent=0
    _
  %s4 = ssub.s32 1, %s2
  %s5 = scalar_select 0, %s4, %s2
  %6 = sst [smem:[#allocation3]] %s0
  $region1: #{tpu_custom_call.1} parent=0
    #allocation4 [shape = 'u8[4096]{0}', space=vmem, size = 0x1000, scoped, tag = 'output window, operand 0, single buffered']
    #allocation5 [shape = 's32[1]{0}', space=sflag, size = 0x4, scoped, tag = 'scoped memory for tpu_custom_call.1']
    %7 = vsyncpa [#allocation5], 0
    %s8 = sld [smem:[#allocation3]]
    %v9 = vlaneseq
    %v10 = vstv %s8
    %v11 = vxor.u32 %v10, %v10
    %v12 = vxor.u32 %v11, 466688986
    %v13 = vadd.s32 %v9, %v10
    %v14 = vadd.s32 %v13, %v13
    %v15 = vshll.u32 %v13, 13
    %v16 = vshrl.u32 %v13, 19
    %v17 = vor.u32 %v15, %v16
    %v18 = vxor.u32 %v14, %v17
    %v19 = vadd.s32 %v14, %v18
    %v20 = vshll.u32 %v18, 15
    %v21 = vshrl.u32 %v18, 17
    %v22 = vor.u32 %v20, %v21
    %v23 = vxor.u32 %v19, %v22
    %v24 = vadd.s32 %v19, %v23
    %v25 = vshll.u32 %v23, 26
    %v26 = vshrl.u32 %v23, 6
    %v27 = vor.u32 %v25, %v26
    %v28 = vxor.u32 %v24, %v27
    %v29 = vadd.s32 %v24, %v28
    %v30 = vshll.u32 %v28, 6
    %v31 = vshrl.u32 %v28, 26
    %v32 = vor.u32 %v30, %v31
    %v33 = vxor.u32 %v29, %v32
    %v34 = vadd.s32 %v29, %v10
    %v35 = vadd.s32 %v33, %v12
    %v36 = vadd.s32 %v35, 1
    %v37 = vadd.s32 %v34, %v36
    %v38 = vshll.u32 %v36, 17
    %v39 = vshrl.u32 %v36, 15
    %v40 = vor.u32 %v38, %v39
    %v41 = vxor.u32 %v37, %v40
    %v42 = vadd.s32 %v37, %v41
    %v43 = vshll.u32 %v41, 29
    %v44 = vshrl.u32 %v41, 3
    %v45 = vor.u32 %v43, %v44
    %v46 = vxor.u32 %v42, %v45
    %v47 = vadd.s32 %v42, %v46
    %v48 = vshll.u32 %v46, 16
    %v49 = vshrl.u32 %v46, 16
    %v50 = vor.u32 %v48, %v49
    %v51 = vxor.u32 %v47, %v50
    %v52 = vadd.s32 %v47, %v51
    %v53 = vshll.u32 %v51, 24
    %v54 = vshrl.u32 %v51, 8
    %v55 = vor.u32 %v53, %v54
    %v56 = vxor.u32 %v52, %v55
    %v57 = vadd.s32 %v52, %v12
    %v58 = vadd.s32 %v56, %v10
    %v59 = vadd.s32 %v58, 2
    %v60 = vadd.s32 %v57, %v59
    %v61 = vshll.u32 %v59, 13
    %v62 = vshrl.u32 %v59, 19
    %v63 = vor.u32 %v61, %v62
    %v64 = vxor.u32 %v60, %v63
    %v65 = vadd.s32 %v60, %v64
    %v66 = vshll.u32 %v64, 15
    %v67 = vshrl.u32 %v64, 17
    %v68 = vor.u32 %v66, %v67
    %v69 = vxor.u32 %v65, %v68
    %v70 = vadd.s32 %v65, %v69
    %v71 = vshll.u32 %v69, 26
    %v72 = vshrl.u32 %v69, 6
    %v73 = vor.u32 %v71, %v72
    %v74 = vxor.u32 %v70, %v73
    %v75 = vadd.s32 %v70, %v74
    %v76 = vshll.u32 %v74, 6
    %v77 = vshrl.u32 %v74, 26
    %v78 = vor.u32 %v76, %v77
    %v79 = vxor.u32 %v75, %v78
    %v80 = vadd.s32 %v75, %v10
    %v81 = vadd.s32 %v79, %v10
    %v82 = vadd.s32 %v81, 3
    %v83 = vadd.s32 %v80, %v82
    %v84 = vshll.u32 %v82, 17
    %v85 = vshrl.u32 %v82, 15
    %v86 = vor.u32 %v84, %v85
    %v87 = vxor.u32 %v83, %v86
    %v88 = vadd.s32 %v83, %v87
    %v89 = vshll.u32 %v87, 29
    %v90 = vshrl.u32 %v87, 3
    %v91 = vor.u32 %v89, %v90
    %v92 = vxor.u32 %v88, %v91
    %v93 = vadd.s32 %v88, %v92
    %v94 = vshll.u32 %v92, 16
    %v95 = vshrl.u32 %v92, 16
    %v96 = vor.u32 %v94, %v95
    %v97 = vxor.u32 %v93, %v96
    %v98 = vadd.s32 %v93, %v97
    %v99 = vshll.u32 %v97, 24
    %v100 = vshrl.u32 %v97, 8
    %v101 = vor.u32 %v99, %v100
    %v102 = vxor.u32 %v98, %v101
    %v103 = vadd.s32 %v98, %v10
    %v104 = vadd.s32 %v102, %v12
    %v105 = vadd.s32 %v104, 4
    %v106 = vadd.s32 %v103, %v105
    %v107 = vshll.u32 %v105, 13
    %v108 = vshrl.u32 %v105, 19
    %v109 = vor.u32 %v107, %v108
    %v110 = vxor.u32 %v106, %v109
    %v111 = vadd.s32 %v106, %v110
    %v112 = vshll.u32 %v110, 15
    %v113 = vshrl.u32 %v110, 17
    %v114 = vor.u32 %v112, %v113
    %v115 = vxor.u32 %v111, %v114
    %v116 = vadd.s32 %v111, %v115
    %v117 = vshll.u32 %v115, 26
    %v118 = vshrl.u32 %v115, 6
    %v119 = vor.u32 %v117, %v118
    %v120 = vxor.u32 %v116, %v119
    %v121 = vadd.s32 %v116, %v120
    %v122 = vshll.u32 %v120, 6
    %v123 = vshrl.u32 %v120, 26
    %v124 = vor.u32 %v122, %v123
    %v125 = vxor.u32 %v121, %v124
    %v126 = vadd.s32 %v121, %v12
    %v127 = vadd.s32 %v125, %v10
    %v128 = vadd.s32 %v127, 5
    %v129 = vxor.u32 %v126, %v128
    %130 = set.rngseed %v129
    %v131 = vrng
    %v132 = vshrl.u32 %v131, 9
    %v133 = vor.u32 %v132, 1065353216
    %v135 = vsub.f32 %v133, 1.0
    %v136 = vmul.f32 %v135, 2.0
    %v137 = vadd.f32 %v136, -0.99999994
    %v138 = vmax.f32 %v137, -0.99999994
    %v139 = vsub.f32 0.0, %v138
    %v140 = vmul.f32 %v138, %v139
    %v141 = vadd.f32 %v140, 1.0
    %v142 = vlog2.pop %v141
    %v143 = vmul.f32 %v142, 0.6931472
    %v144 = vmul.f32 -0.5, %v140
    %v145 = vadd.f32 %v144, 1.0
    %v146 = vmul.f32 %v145, %v140
    %v147 = vand.u32 2147483647, %v140
    %vm148 = vcmp.lt.f32.partialorder %v147, 0.0004427343
    %v149 = vsel %vm148, %v146, %v143
    %v150 = vsub.f32 0.0, %v149
    %vm151 = vcmp.lt.f32.partialorder %v150, 5.0
    %v152 = vsub.f32 %v150, 2.5
    %v153 = vrsqrt.pop %v150
    %v154 = vmul.f32 %v150, %v153
    %vm155 = vcmp.eq.f32.partialorder %v150, inf
    %v156 = vsel %vm155, %v150, %v154
    %vm157 = vcmp.eq.f32.partialorder %v150, 0.0
    %v158 = vand.u32 %v150, 2147483648
    %v159 = vsel %vm157, %v158, %v156
    %v160 = vsub.f32 %v159, 3.0
    %v161 = vsel %vm151, %v152, %v160
    %v162 = vsel %vm151, 2.8102264e-08, -0.00020021426
    %v163 = vsel %vm151, 3.4327394e-07, 0.00010095056
    %v164 = vmul.f32 %v162, %v161
    %v165 = vadd.f32 %v163, %v164
    %v166 = vsel %vm151, -3.5233877e-06, 0.0013493432
    %v167 = vmul.f32 %v165, %v161
    %v168 = vadd.f32 %v166, %v167
    %v169 = vsel %vm151, -4.3915065e-06, -0.0036734284
    %v170 = vmul.f32 %v168, %v161
    %v171 = vadd.f32 %v169, %v170
    %v172 = vsel %vm151, 0.00021858087, 0.0057395077
    %v173 = vmul.f32 %v171, %v161
    %v174 = vadd.f32 %v172, %v173
    %v175 = vsel %vm151, -0.001253725, -0.0076224613
    %v176 = vmul.f32 %v174, %v161
    %v177 = vadd.f32 %v175, %v176
    %v178 = vsel %vm151, -0.0041776816, 0.0094388705
    %v179 = vmul.f32 %v177, %v161
    %v180 = vadd.f32 %v178, %v179
    %v181 = vsel %vm151, 0.24664073, 1.001674
    %v182 = vmul.f32 %v180, %v161
    %v183 = vadd.f32 %v181, %v182
    %v184 = vsel %vm151, 1.5014094, 2.8329768
    %v185 = vmul.f32 %v183, %v161
    %v186 = vadd.f32 %v184, %v185
    %v187 = vand.u32 2147483647, %v138
    %vm188 = vcmp.eq.f32.partialorder %v187, 1.0
    %v189 = vmul.f32 %v138, inf
    %v190 = vmul.f32 %v186, %v138
    %v191 = vsel %vm188, %v189, %v190
    %v192 = vmul.f32 %v191, 1.4142135
    %193 = vst [vmem:[#allocation4] sm:$0xff] %v192
    // Predicated region
    $region2: #{tpu_custom_call.1} parent=1 // pred_check
      _
    $region3: #{tpu_custom_call.1} parent=1 // pred_check_branch
      %195 = sbr.rel (0) target = $region5
    $region4: #{tpu_custom_call.1} parent=1 // pred_region
      %s197 = ssub.s32 128, 128
      %198 = vsyncadd [#allocation5], %s197
      %s200 = sshll.u32 [#allocation4], 4
      %s201 = int_to_ptr.vmem [resolvable:$true] %s200
      %203 = dma.vmem_to_hbm [thread:$0]  %s201, 128, %s1, [#allocation5]
    $region5: #{tpu_custom_call.1} parent=1 // pred_fallthru
      _
    // Predicated region
    $region6: #{tpu_custom_call.1} parent=1 // pred_check
      _
    $region7: #{tpu_custom_call.1} parent=1 // pred_check_branch
      %205 = sbr.rel (0) target = $region9
    $region8: #{tpu_custom_call.1} parent=1 // pred_region
      %206 = dma.done [#allocation5], 128
    $region9: #{tpu_custom_call.1} parent=1 // pred_fallthru
      _
    %207 = vsyncpa [#allocation5], 1

// kernel: _gaussian_q_sample.1
$region0: #{_gaussian_q_sample.1}
  #allocation0 [shape = 'u32[]', space=smem, size = 0x4, offset = 0x4, fixed_abs, tag = 'smem constant byte address 0x4 - core index']
  #allocation1 [shape = 'u32[144,128]{1,0:T(1,128)}', space=vmem, size = 0x12000, scoped, tag = 'internal scratch']
  #allocation2 [shape = 's32[1]{0}', space=sflag, size = 0x4, scoped, tag = 'scoped memory for _gaussian_q_sample.1']
  #allocation3 [shape = 'u8[512]{0}', space=smem, size = 0x200, scoped, tag = 'prefetched SMEM operand 0']
  #allocation4 [shape = 'u8[512]{0}', space=smem, size = 0x200, scoped, tag = 'prefetched SMEM operand 1']
  #allocation5 [shape = 's32[1]{0:T(128)S(6)}', space=smem, size = 0x200, scoped, tag = 'prefetched SMEM operand 2']
  %s0 = inlined_call_operand.vmem [shape: f32[2], index: 0, kind: input, shape index: {}]
  %s1 = inlined_call_operand.vmem [shape: f32[2], index: 1, kind: input, shape index: {}]
  %s2 = inlined_call_operand.<no memory space> [shape: s32[1], index: 2, kind: input, shape index: {}]
  %s3 = inlined_call_operand.vmem [shape: f32[2,8,128], index: 3, kind: input, shape index: {}]
  %s4 = inlined_call_operand.vmem [shape: f32[2,8,128], index: 4, kind: input, shape index: {}]
  %s5 = inlined_call_operand.vmem [shape: f32[2,8,128], index: 5, kind: output, shape index: {}]
  %s6 = sld [smem:[#allocation0]]
  $region41: #{_gaussian_q_sample.1} parent=0
    _
  %s8 = ssub.s32 1, %s6
  %s9 = scalar_select 0, %s8, %s6
  %s10 = sshll.u32 %s0, 4
  %s11 = int_to_ptr.vmem [resolvable:$true] %s10
  %13 = dma.vmem_to_smem %s11, 16, [#allocation3], [#allocation2]
  %s14 = sshll.u32 %s1, 4
  %s15 = int_to_ptr.vmem [resolvable:$true] %s14
  %17 = dma.vmem_to_smem %s15, 16, [#allocation4], [#allocation2]
  %18 = sst [smem:[#allocation5]] %s2
  %19 = dma.done [#allocation2], 32
  %20 = sfence
  loop: start=0, step=1, limit=4
  $region2: #{_gaussian_q_sample.1} parent=0 // loop_pre_header
    _
  $region3: #{_gaussian_q_sample.1} parent=0 // loop_header
    %s22 = sphi 0, %s26
    %p23 = scmp.ge.s32.totalorder %s22, 4
    %s29 = sphi 0, %s41
    %s30 = sphi 0, %s37
    %s31 = sphi 0, %s29
    %s32 = sphi 0, %s30
    %s33 = sphi 0, %s31
    %s34 = sphi 0, %s32
    %s46 = sphi 0, %s48
    %s49 = sphi 0, %s46
    %s50 = sphi 0, %s49
    %s66 = sphi 0, %s50
    %s74 = sphi 0, %s76
    %s77 = sphi 0, %s74
    %s78 = sphi 0, %s77
    %s94 = sphi 0, %s78
    %s102 = sphi 0, %s104
    %s105 = sphi 0, %s102
    %s106 = sphi 0, %s105
    %s122 = sphi 0, %s106
  $region4: #{_gaussian_q_sample.1} parent=0 // loop_header_branch
    %25 = sbr.rel (%p23) target = $region8
  $region5: #{_gaussian_q_sample.1} parent=0 // loop_body
    %s27 = ssub.s32 %s22, 1
    %s28 = ssub.s32 %s22, 2
    %s35 = sadd.s32 1, %s30
    %p36 = scmp.ge.s32.totalorder %s35, 1
    %s37 = scalar_select %p36, 0, %s35
    %s38 = sadd.s32 1, %s29
    %s39 = scalar_select %p36, %s38, %s29
    %p40 = scmp.ge.s32.totalorder %s39, 2
    %s41 = scalar_select %p40, 0, %s39
    %s42 = ssub.s32 %s29, %s41
    %s43 = ssub.s32 %s30, %s37
    %s44 = sor.u32 %s42, %s43
    %p45 = scmp.eq.s32.totalorder %s44, 0
    %s47 = sadd.s32 %s46, 1
    %s48 = scalar_select %p45, %s46, %s47
    %p51 = pneg %p45
    %p52 = scmp.eq.s32.totalorder %s22, 1
    %p53 = por %p51, %p52
    %p54 = scmp.ne.s32.totalorder %s46, %s49
    %p55 = scmp.eq.s32.totalorder %s22, 0
    %p56 = por %p54, %p55
    %p57 = scmp.ne.s32.totalorder %s46, %s49
    %p58 = scmp.eq.s32.totalorder %s27, 1
    %p59 = por %p57, %p58
    %p60 = scmp.ne.s32.totalorder %s49, %s50
    %p61 = scmp.eq.s32.totalorder %s27, 0
    %p62 = por %p60, %p61
    %p63 = scmp.ne.s32.totalorder %s49, %s50
    %p64 = scmp.eq.s32.totalorder %s28, 1
    %p65 = por %p63, %p64
    %p67 = scmp.ne.s32.totalorder %s50, %s66
    %p68 = scmp.eq.s32.totalorder %s28, 0
    %p69 = por %p67, %p68
    %s70 = ssub.s32 %s29, %s41
    %s71 = ssub.s32 %s30, %s37
    %s72 = sor.u32 %s70, %s71
    %p73 = scmp.eq.s32.totalorder %s72, 0
    %s75 = sadd.s32 %s74, 1
    %s76 = scalar_select %p73, %s74, %s75
    %p79 = pneg %p73
    %p80 = scmp.eq.s32.totalorder %s22, 1
    %p81 = por %p79, %p80
    %p82 = scmp.ne.s32.totalorder %s74, %s77
    %p83 = scmp.eq.s32.totalorder %s22, 0
    %p84 = por %p82, %p83
    %p85 = scmp.ne.s32.totalorder %s74, %s77
    %p86 = scmp.eq.s32.totalorder %s27, 1
    %p87 = por %p85, %p86
    %p88 = scmp.ne.s32.totalorder %s77, %s78
    %p89 = scmp.eq.s32.totalorder %s27, 0
    %p90 = por %p88, %p89
    %p91 = scmp.ne.s32.totalorder %s77, %s78
    %p92 = scmp.eq.s32.totalorder %s28, 1
    %p93 = por %p91, %p92
    %p95 = scmp.ne.s32.totalorder %s78, %s94
    %p96 = scmp.eq.s32.totalorder %s28, 0
    %p97 = por %p95, %p96
    %s98 = ssub.s32 %s29, %s41
    %s99 = ssub.s32 %s30, %s37
    %s100 = sor.u32 %s98, %s99
    %p101 = scmp.eq.s32.totalorder %s100, 0
    %s103 = sadd.s32 %s102, 1
    %s104 = scalar_select %p101, %s102, %s103
    %p107 = pneg %p101
    %p108 = scmp.eq.s32.totalorder %s22, 1
    %p109 = por %p107, %p108
    %p110 = scmp.ne.s32.totalorder %s102, %s105
    %p111 = scmp.eq.s32.totalorder %s22, 0
    %p112 = por %p110, %p111
    %p113 = scmp.ne.s32.totalorder %s102, %s105
    %p114 = scmp.eq.s32.totalorder %s27, 1
    %p115 = por %p113, %p114
    %p116 = scmp.ne.s32.totalorder %s105, %s106
    %p117 = scmp.eq.s32.totalorder %s27, 0
    %p118 = por %p116, %p117
    %p119 = scmp.ne.s32.totalorder %s105, %s106
    %p120 = scmp.eq.s32.totalorder %s28, 1
    %p121 = por %p119, %p120
    %p123 = scmp.ne.s32.totalorder %s106, %s122
    %p124 = scmp.eq.s32.totalorder %s28, 0
    %p125 = por %p123, %p124
    %p126 = scmp.le.s32.totalorder 1, %s22
    %p127 = scmp.lt.s32.totalorder %s22, 3
    %p128 = pnand %p126, %p127
    %p129 = pneg %p128
    // Predicated region
    $region9: #{_gaussian_q_sample.1} parent=5 // pred_check
      _
    $region10: #{_gaussian_q_sample.1} parent=5 // pred_check_branch
      %131 = sbr.rel (%p128) target = $region12
    $region11: #{_gaussian_q_sample.1} parent=5 // pred_region
      %s132 = ssub.s32 %s22, 1
    $region12: #{_gaussian_q_sample.1} parent=5 // pred_fallthru
      _
    %p133 = scmp.lt.s32.totalorder %s22, 2
    // Predicated region
    $region13: #{_gaussian_q_sample.1} parent=5 // pred_check
      %p134 = pneg %p133
    $region14: #{_gaussian_q_sample.1} parent=5 // pred_check_branch
      %136 = sbr.rel (%p134) target = $region16
    $region15: #{_gaussian_q_sample.1} parent=5 // pred_region
      // Predicated region
      $region17: #{_gaussian_q_sample.1} parent=15 // pred_check
        %p137 = pneg %p56
      $region18: #{_gaussian_q_sample.1} parent=15 // pred_check_branch
        %139 = sbr.rel (%p137) target = $region20
      $region19: #{_gaussian_q_sample.1} parent=15 // pred_region
        %p140 = scmp.lt.s32.totalorder %s29, 1
        %s141 = scalar_select %p140, %s29, 1
        %p142 = scmp.lt.s32.totalorder %s30, 0
        %s143 = scalar_select %p142, %s30, 0
        %s144 = sadd.s32 %s143, %s141
        %s145 = smul.addr %s144, 8
        %s146 = scalar_lea.vmem %s3, %s145
      $region20: #{_gaussian_q_sample.1} parent=15 // pred_fallthru
        _
      // Predicated region
      $region21: #{_gaussian_q_sample.1} parent=15 // pred_check
        %p147 = pneg %p84
      $region22: #{_gaussian_q_sample.1} parent=15 // pred_check_branch
        %149 = sbr.rel (%p147) target = $region24
      $region23: #{_gaussian_q_sample.1} parent=15 // pred_region
        %p150 = scmp.lt.s32.totalorder %s29, 1
        %s151 = scalar_select %p150, %s29, 1
        %p152 = scmp.lt.s32.totalorder %s30, 0
        %s153 = scalar_select %p152, %s30, 0
        %s154 = sadd.s32 %s153, %s151
        %s155 = smul.addr %s154, 8
        %s156 = scalar_lea.vmem %s4, %s155
      $region24: #{_gaussian_q_sample.1} parent=15 // pred_fallthru
        _
    $region16: #{_gaussian_q_sample.1} parent=5 // pred_fallthru
      _
    %p157 = scmp.le.s32.totalorder 1, %s22
    %p158 = scmp.lt.s32.totalorder %s22, 3
    %p159 = pnand %p157, %p158
    %p160 = pneg %p159
    // Predicated region
    $region25: #{_gaussian_q_sample.1} parent=5 // pred_check
      _
    $region26: #{_gaussian_q_sample.1} parent=5 // pred_check_branch
      %162 = sbr.rel (%p159) target = $region28
    $region27: #{_gaussian_q_sample.1} parent=5 // pred_region
      %s163 = ssub.s32 %s22, 1
      %p164 = scmp.lt.s32.totalorder %s31, 1
      %s165 = scalar_select %p164, %s31, 1
      %p166 = scmp.lt.s32.totalorder %s32, 0
      %s167 = scalar_select %p166, %s32, 0
      %s168 = sadd.s32 %s167, %s165
      %s169 = smul.addr %s168, 8
      %s170 = scalar_lea.vmem %s3, %s169
      %p171 = pneg %p62
      %p172 = pneg %p59
      %p173 = scmp.lt.s32.totalorder %s31, 1
      %s174 = scalar_select %p173, %s31, 1
      %p175 = scmp.lt.s32.totalorder %s32, 0
      %s176 = scalar_select %p175, %s32, 0
      %s177 = sadd.s32 %s176, %s174
      %s178 = smul.addr %s177, 8
      %s179 = scalar_lea.vmem %s4, %s178
      %p180 = pneg %p90
      %p181 = pneg %p87
      %p182 = pneg %p118
      %p183 = pneg %p115
      %p184 = scmp.lt.s32.totalorder %s31, 1
      %s185 = scalar_select %p184, %s31, 1
      %p186 = scmp.lt.s32.totalorder %s32, 0
      %s187 = scalar_select %p186, %s32, 0
      %s188 = sadd.s32 %s187, %s185
      %s189 = smul.addr %s188, 8
      %s190 = scalar_lea.vmem %s5, %s189
      %p191 = scmp.lt.s32.totalorder %s31, 1
      %s192 = scalar_select %p191, %s31, 1
      %p193 = scmp.lt.s32.totalorder %s32, 0
      %s194 = scalar_select %p193, %s32, 0
      %s195 = sadd.s32 %s194, %s192
      %s196 = smul.addr %s195, 8
      %s197 = scalar_lea.vmem %s3, %s196
      %p198 = scmp.lt.s32.totalorder %s31, 1
      %s199 = scalar_select %p198, %s31, 1
      %p200 = scmp.lt.s32.totalorder %s32, 0
      %s201 = scalar_select %p200, %s32, 0
      %s202 = sadd.s32 %s201, %s199
      %s203 = smul.addr %s202, 8
      %s204 = scalar_lea.vmem %s4, %s203
      %p205 = scmp.lt.s32.totalorder %s31, 1
      %s206 = scalar_select %p205, %s31, 1
      %p207 = scmp.lt.s32.totalorder %s32, 0
      %s208 = scalar_select %p207, %s32, 0
      %s209 = sadd.s32 %s208, %s206
      %s210 = smul.addr %s209, 8
      %s211 = scalar_lea.vmem %s5, %s210
      %s212 = sld [smem:[#allocation3 + %s31]]
      %v213 = vld [vmem:[%s197] sm:$0xff]
      %v214 = vstv %s212
      %v215 = vmul.f32 %v214, %v213
      %s216 = sld [smem:[#allocation4 + %s31]]
      %v217 = vld [vmem:[%s204] sm:$0xff]
      %v218 = vstv %s216
      %v219 = vmul.f32 %v218, %v217
      %v220 = vadd.f32 %v215, %v219
      %221 = vst [vmem:[%s211] sm:$0xff] %v220
      %p222 = scmp.lt.s32.totalorder %s31, 1
      %s223 = scalar_select %p222, %s31, 1
      %p224 = scmp.lt.s32.totalorder %s32, 0
      %s225 = scalar_select %p224, %s32, 0
      %s226 = sadd.s32 %s225, %s223
      %s227 = smul.addr %s226, 8
      %s228 = scalar_lea.vmem %s5, %s227
      // Predicated region
      $region29: #{_gaussian_q_sample.1} parent=27 // pred_check
        %p229 = pneg %p115
      $region30: #{_gaussian_q_sample.1} parent=27 // pred_check_branch
        %231 = sbr.rel (%p229) target = $region32
      $region31: #{_gaussian_q_sample.1} parent=27 // pred_region
        _
      $region32: #{_gaussian_q_sample.1} parent=27 // pred_fallthru
        _
    $region28: #{_gaussian_q_sample.1} parent=5 // pred_fallthru
      _
    %p232 = scmp.le.s32.totalorder 2, %s22
    // Predicated region
    $region33: #{_gaussian_q_sample.1} parent=5 // pred_check
      %p233 = pneg %p232
    $region34: #{_gaussian_q_sample.1} parent=5 // pred_check_branch
      %235 = sbr.rel (%p233) target = $region36
    $region35: #{_gaussian_q_sample.1} parent=5 // pred_region
      %s236 = ssub.s32 %s22, 2
      // Predicated region
      $region37: #{_gaussian_q_sample.1} parent=35 // pred_check
        %p237 = pneg %p121
      $region38: #{_gaussian_q_sample.1} parent=35 // pred_check_branch
        %239 = sbr.rel (%p237) target = $region40
      $region39: #{_gaussian_q_sample.1} parent=35 // pred_region
        %p240 = scmp.lt.s32.totalorder %s33, 1
        %s241 = scalar_select %p240, %s33, 1
        %p242 = scmp.lt.s32.totalorder %s34, 0
        %s243 = scalar_select %p242, %s34, 0
        %s244 = sadd.s32 %s243, %s241
        %s245 = smul.addr %s244, 8
        %s246 = scalar_lea.vmem %s5, %s245
      $region40: #{_gaussian_q_sample.1} parent=35 // pred_fallthru
        _
    $region36: #{_gaussian_q_sample.1} parent=5 // pred_fallthru
      _
  $region6: #{_gaussian_q_sample.1} parent=0 // loop_footer
    %s26 = sadd.s32 1, %s22
  $region7: #{_gaussian_q_sample.1} parent=0 // loop_footer_branch
    %21 = sbr.rel target = $region3
  $region8: #{_gaussian_q_sample.1} parent=0 // loop_exit
    _

</llo_original>
